<compile_context>
chip_gen: v7x
topology: tpu7x:2x2x1
jax: 0.10.0
libtpu: 0.0.40
codegen_flags: <defaults>
</compile_context>

<pallas_src>
import jax
import jax.numpy as jnp
from jax.experimental import pallas as pl
from jax.experimental.pallas import tpu as pltpu


def se_block_kernel(x_ref, w1_ref, b1_ref, alpha_ref, w2_ref, b2_ref, o_ref):
    """One grid step processes Nb batch elements.

    x_ref:     (Nb, C, HW)   activations (any float dtype; math in f32)
    w1_ref:    (Cr, C)       conv1 1x1 weight        b1_ref: (Cr, 1)
    alpha_ref: (Cr, 1)       PReLU per-channel slope
    w2_ref:    (C, Cr)       conv2 1x1 weight        b2_ref: (C, 1)
    o_ref:     (Nb, C, HW)
    """
    nb = x_ref.shape[0]

    # --- squeeze: AdaptiveAvgPool2d(1) == mean over spatial (lane axis) ---
    # Build a (C, Nb) matrix of pooled means: channels on sublanes, batch on
    # lanes.  This keeps the excitation in the same channels-on-sublanes layout
    # as x, so the final gate is a plain lane-broadcast column (no transposes).
    cols = []
    for n in range(nb):                                   # nb is static
        xn = x_ref[n].astype(jnp.float32)                 # (C, HW)
        cols.append(jnp.mean(xn, axis=-1, keepdims=True))  # (C, 1)
    pooled = cols[0] if nb == 1 else jnp.concatenate(cols, axis=1)  # (C, Nb)

    # --- excitation: 1x1 conv (C -> Cr) + bias, batched over Nb columns ---
    h = jnp.dot(w1_ref[...], pooled,
                preferred_element_type=jnp.float32) + b1_ref[...]    # (Cr, Nb)
    # PReLU with per-channel alpha.
    h = jnp.where(h >= 0, h, alpha_ref[...] * h)                     # (Cr, Nb)
    # 1x1 conv (Cr -> C) + bias.
    y = jnp.dot(w2_ref[...], h,
                preferred_element_type=jnp.float32) + b2_ref[...]    # (C, Nb)
    gate = jax.nn.sigmoid(y)                                         # (C, Nb)

    # --- scale: x * gate; column n broadcasts over the HW lane axis ---
    for n in range(nb):
        xn = x_ref[n].astype(jnp.float32)                 # (C, HW)
        o_ref[n] = (xn * gate[:, n:n + 1]).astype(o_ref.dtype)


def _largest_divisor_leq(n, cap):
    best = 1
    for d in range(1, min(n, cap) + 1):
        if n % d == 0:
            best = d
    return best


def se_block(x_nchw, w1, b1, alpha, w2, b2, *,
             block_budget_bytes=8 * 1024 * 1024,
             vmem_limit_bytes=48 * 1024 * 1024):
    """x_nchw: (N, C, H, W) float. Returns (N, C, H, W) in the same dtype.

    Works for f32 or bf16 activations; internal math is f32.
    """
    N, C, H, W = x_nchw.shape
    HW = H * W
    Cr = w1.shape[0]

    x3 = x_nchw.reshape(N, C, HW)               # free view of row-major NCHW
    itemsize = jnp.dtype(x3.dtype).itemsize
    per_elem_bytes = C * HW * itemsize

    # Batch Nb images per grid step.  With double-buffered in + out tiles the
    # resident data is ~4x the block, so keep 4 * Nb * per_elem <= ~4*budget.
    # The default budget is sized for v7x's 64 MiB VMEM; v5e/v6e have headroom.
    cap = max(1, block_budget_bytes // max(per_elem_bytes, 1))
    cap = min(cap, 128)                         # bound in-kernel unroll length
    nb = _largest_divisor_leq(N, cap)
    # Prefer >=2 grid steps (v7x megacore sharding / deeper pipelining) as long
    # as each block stays comfortably large; otherwise keep maximal batching.
    if N // nb < 2:
        half = _largest_divisor_leq(N, max(1, nb // 2))
        if half < nb and half * per_elem_bytes >= (1 << 20):
            nb = half

    b1c = b1.reshape(Cr, 1)
    b2c = b2.reshape(C, 1)
    alphac = alpha.reshape(Cr, 1)

    # Advisory cost hint so XLA schedules overlap around the custom call.
    param_bytes = int((w1.size + w2.size + b1.size + b2.size + alpha.size) * 4)
    cost = pl.CostEstimate(
        flops=int(2 * N * C * HW + 4 * N * C * Cr),
        transcendentals=int(N * C),
        bytes_accessed=int(2 * N * C * HW * itemsize + param_bytes),
    )

    out3 = pl.pallas_call(
        se_block_kernel,
        out_shape=jax.ShapeDtypeStruct((N, C, HW), x3.dtype),
        grid_spec=pltpu.PrefetchScalarGridSpec(
            num_scalar_prefetch=0,
            grid=(N // nb,),
            in_specs=[
                pl.BlockSpec((nb, C, HW), lambda i: (i, 0, 0)),
                pl.BlockSpec((Cr, C), lambda i: (0, 0)),
                pl.BlockSpec((Cr, 1), lambda i: (0, 0)),
                pl.BlockSpec((Cr, 1), lambda i: (0, 0)),
                pl.BlockSpec((C, Cr), lambda i: (0, 0)),
                pl.BlockSpec((C, 1), lambda i: (0, 0)),
            ],
            # Store lane width equals HW, so it is fully lane-dense whenever HW
            # is a multiple of 128.  A lane-dense NHWC layout for small feature
            # maps would need an extra HBM transpose outside this op, so the
            # native NCHW-flattened layout is kept.
            out_specs=pl.BlockSpec((nb, C, HW), lambda i: (i, 0, 0)),
        ),
        compiler_params=pltpu.CompilerParams(
            dimension_semantics=("parallel",),
            vmem_limit_bytes=vmem_limit_bytes,
        ),
        cost_estimate=cost,
    )(x3, w1, b1c, alphac, w2, b2c)

    return out3.reshape(N, C, H, W)


def reference_se_block(x, w1, b1, alpha, w2, b2):
    """Pure-JAX reference matching the PyTorch forward."""
    y = jnp.mean(x, axis=(2, 3))                       # (N, C)
    y = y @ w1.T + b1                                  # (N, Cr)
    y = jnp.where(y >= 0, y, alpha[None, :] * y)       # PReLU
    y = y @ w2.T + b2                                  # (N, C)
    y = jax.nn.sigmoid(y)
    return x * y[:, :, None, None]


if __name__ == "__main__":
    key = jax.random.PRNGKey(0)
    N, C, H, W = 2, 32, 8, 8
    reduction = 16
    Cr = C // reduction

    k_x, k_w1, k_b1, k_w2, k_b2 = jax.random.split(key, 5)
    x = jax.random.normal(k_x, (N, C, H, W), dtype=jnp.float32)

    # Synthetic parameters with nn.Conv2d-1x1 / nn.PReLU shapes.
    w1 = jax.random.normal(k_w1, (Cr, C), dtype=jnp.float32) * 0.1   # conv1 weight (Cr, C, 1, 1)
    b1 = jax.random.normal(k_b1, (Cr,), dtype=jnp.float32) * 0.1     # conv1 bias
    alpha = jnp.full((Cr,), 0.25, dtype=jnp.float32)                 # PReLU default init
    w2 = jax.random.normal(k_w2, (C, Cr), dtype=jnp.float32) * 0.1   # conv2 weight (C, Cr, 1, 1)
    b2 = jax.random.normal(k_b2, (C,), dtype=jnp.float32) * 0.1      # conv2 bias

    out = se_block(x, w1, b1, alpha, w2, b2)
    out = jax.block_until_ready(out)

    ref = reference_se_block(x, w1, b1, alpha, w2, b2)
    assert out.shape == (N, C, H, W)
    assert jnp.allclose(out, ref, atol=1e-5, rtol=1e-5), "mismatch vs reference"

    print("KERNEL_OK")
</pallas_src>

<mosaic_0001>
module attributes {stable_mosaic.version = 11 : i64} {
  func.func @se_block_kernel(%arg0: i32, %arg1: memref<2x32x64xf32, #tpu.memory_space<vmem>>, %arg2: memref<2x32xf32, #tpu.memory_space<vmem>>, %arg3: memref<2x1xf32, #tpu.memory_space<vmem>>, %arg4: memref<2x1xf32, #tpu.memory_space<vmem>>, %arg5: memref<32x2xf32, #tpu.memory_space<vmem>>, %arg6: memref<32x1xf32, #tpu.memory_space<vmem>>, %arg7: memref<2x32x64xf32, #tpu.memory_space<vmem>>) attributes {dimension_semantics = [#tpu.dimension_semantics<parallel>], iteration_bounds = array<i64: 1>, scalar_prefetch = 0 : i64, scratch_operands = 0 : i64, tpu.core_type = #tpu.core_type<tc>, window_params = [{transform_indices = @transform_0, window_bounds = array<i64: 2, 32, 64>}, {pipeline_mode = #tpu.pipeline_mode<synchronous>, transform_indices = @transform_1, window_bounds = array<i64: 2, 32>}, {pipeline_mode = #tpu.pipeline_mode<synchronous>, transform_indices = @transform_2, window_bounds = array<i64: 2, 1>}, {pipeline_mode = #tpu.pipeline_mode<synchronous>, transform_indices = @transform_3, window_bounds = array<i64: 2, 1>}, {pipeline_mode = #tpu.pipeline_mode<synchronous>, transform_indices = @transform_4, window_bounds = array<i64: 32, 2>}, {pipeline_mode = #tpu.pipeline_mode<synchronous>, transform_indices = @transform_5, window_bounds = array<i64: 32, 1>}, {transform_indices = @transform_6, window_bounds = array<i64: 2, 32, 64>}]} {
    %c0 = arith.constant 0 : index
    %c0_0 = arith.constant 0 : index
    %c0_1 = arith.constant 0 : index
    %0 = vector.load %arg1[%c0, %c0_0, %c0_1] : memref<2x32x64xf32, #tpu.memory_space<vmem>>, vector<1x32x64xf32>
    %1 = vector.shape_cast %0 : vector<1x32x64xf32> to vector<32x64xf32>
    %cst = arith.constant dense<0.000000e+00> : vector<32xf32>
    %2 = vector.multi_reduction <add>, %1, %cst [1] : vector<32x64xf32> to vector<32xf32>
    %3 = vector.shape_cast %2 : vector<32xf32> to vector<32x1xf32>
    %cst_2 = arith.constant 6.400000e+01 : f32
    %4 = vector.broadcast %cst_2 : f32 to vector<32x1xf32>
    %5 = arith.divf %3, %4 : vector<32x1xf32>
    %c1 = arith.constant 1 : index
    %c0_3 = arith.constant 0 : index
    %c0_4 = arith.constant 0 : index
    %6 = vector.load %arg1[%c1, %c0_3, %c0_4] : memref<2x32x64xf32, #tpu.memory_space<vmem>>, vector<1x32x64xf32>
    %7 = vector.shape_cast %6 : vector<1x32x64xf32> to vector<32x64xf32>
    %cst_5 = arith.constant dense<0.000000e+00> : vector<32xf32>
    %8 = vector.multi_reduction <add>, %7, %cst_5 [1] : vector<32x64xf32> to vector<32xf32>
    %9 = vector.shape_cast %8 : vector<32xf32> to vector<32x1xf32>
    %cst_6 = arith.constant 6.400000e+01 : f32
    %10 = vector.broadcast %cst_6 : f32 to vector<32x1xf32>
    %11 = arith.divf %9, %10 : vector<32x1xf32>
    %12 = tpu.concatenate %5, %11 in 1 : vector<32x1xf32>, vector<32x1xf32> -> vector<32x2xf32>
    %c0_7 = arith.constant 0 : index
    %c0_8 = arith.constant 0 : index
    %13 = vector.load %arg2[%c0_7, %c0_8] : memref<2x32xf32, #tpu.memory_space<vmem>>, vector<2x32xf32>
    %cst_9 = arith.constant dense<0.000000e+00> : vector<2x2xf32>
    %14 = tpu.matmul %13, %12, %cst_9 {dimension_numbers = #tpu.dot_dimension_numbers<[1], [0], [0], [1], [0, 0, 1, 1], [], []>} : vector<2x32xf32>, vector<32x2xf32>, vector<2x2xf32> -> vector<2x2xf32>
    %c0_10 = arith.constant 0 : index
    %c0_11 = arith.constant 0 : index
    %15 = vector.load %arg3[%c0_10, %c0_11] : memref<2x1xf32, #tpu.memory_space<vmem>>, vector<2x1xf32>
    %16 = vector.broadcast %15 : vector<2x1xf32> to vector<2x2xf32>
    %17 = arith.addf %14, %16 : vector<2x2xf32>
    %cst_12 = arith.constant 0.000000e+00 : f32
    %18 = vector.broadcast %cst_12 : f32 to vector<2x2xf32>
    %19 = arith.cmpf oge, %17, %18 : vector<2x2xf32>
    %c0_13 = arith.constant 0 : index
    %c0_14 = arith.constant 0 : index
    %20 = vector.load %arg4[%c0_13, %c0_14] : memref<2x1xf32, #tpu.memory_space<vmem>>, vector<2x1xf32>
    %21 = vector.broadcast %20 : vector<2x1xf32> to vector<2x2xf32>
    %22 = arith.mulf %21, %17 : vector<2x2xf32>
    %23 = arith.select %19, %17, %22 : vector<2x2xi1>, vector<2x2xf32>
    %c0_15 = arith.constant 0 : index
    %c0_16 = arith.constant 0 : index
    %24 = vector.load %arg5[%c0_15, %c0_16] : memref<32x2xf32, #tpu.memory_space<vmem>>, vector<32x2xf32>
    %cst_17 = arith.constant dense<0.000000e+00> : vector<32x2xf32>
    %25 = tpu.matmul %24, %23, %cst_17 {dimension_numbers = #tpu.dot_dimension_numbers<[1], [0], [0], [1], [0, 0, 1, 1], [], []>} : vector<32x2xf32>, vector<2x2xf32>, vector<32x2xf32> -> vector<32x2xf32>
    %c0_18 = arith.constant 0 : index
    %c0_19 = arith.constant 0 : index
    %26 = vector.load %arg6[%c0_18, %c0_19] : memref<32x1xf32, #tpu.memory_space<vmem>>, vector<32x1xf32>
    %27 = vector.broadcast %26 : vector<32x1xf32> to vector<32x2xf32>
    %28 = arith.addf %25, %27 : vector<32x2xf32>
    %29 = arith.negf %28 : vector<32x2xf32>
    %30 = math.exp %29 : vector<32x2xf32>
    %cst_20 = arith.constant 1.000000e+00 : f32
    %31 = vector.broadcast %cst_20 : f32 to vector<32x2xf32>
    %32 = arith.addf %31, %30 : vector<32x2xf32>
    %33 = arith.divf %31, %32 : vector<32x2xf32>
    %c0_21 = arith.constant 0 : index
    %c0_22 = arith.constant 0 : index
    %c0_23 = arith.constant 0 : index
    %34 = vector.load %arg1[%c0_21, %c0_22, %c0_23] : memref<2x32x64xf32, #tpu.memory_space<vmem>>, vector<1x32x64xf32>
    %35 = vector.shape_cast %34 : vector<1x32x64xf32> to vector<32x64xf32>
    %36 = vector.extract_strided_slice %33 {offsets = [0, 0], sizes = [32, 1], strides = [1, 1]} : vector<32x2xf32> to vector<32x1xf32>
    %37 = vector.broadcast %36 : vector<32x1xf32> to vector<32x64xf32>
    %38 = arith.mulf %35, %37 : vector<32x64xf32>
    %c0_24 = arith.constant 0 : index
    %c0_25 = arith.constant 0 : index
    %c0_26 = arith.constant 0 : index
    %39 = vector.load %arg7[%c0_24, %c0_25, %c0_26] : memref<2x32x64xf32, #tpu.memory_space<vmem>>, vector<1x32x64xf32>
    %40 = vector.shape_cast %39 : vector<1x32x64xf32> to vector<32x64xf32>
    %41 = vector.shape_cast %38 : vector<32x64xf32> to vector<1x32x64xf32>
    tpu.vector_store %arg7[%c0_24, %c0_25, %c0_26], %41 {strides = array<i32>} : memref<2x32x64xf32, #tpu.memory_space<vmem>>, vector<1x32x64xf32>,
    %c1_27 = arith.constant 1 : index
    %c0_28 = arith.constant 0 : index
    %c0_29 = arith.constant 0 : index
    %42 = vector.load %arg1[%c1_27, %c0_28, %c0_29] : memref<2x32x64xf32, #tpu.memory_space<vmem>>, vector<1x32x64xf32>
    %43 = vector.shape_cast %42 : vector<1x32x64xf32> to vector<32x64xf32>
    %44 = vector.extract_strided_slice %33 {offsets = [0, 1], sizes = [32, 1], strides = [1, 1]} : vector<32x2xf32> to vector<32x1xf32>
    %45 = vector.broadcast %44 : vector<32x1xf32> to vector<32x64xf32>
    %46 = arith.mulf %43, %45 : vector<32x64xf32>
    %c1_30 = arith.constant 1 : index
    %c0_31 = arith.constant 0 : index
    %c0_32 = arith.constant 0 : index
    %47 = vector.load %arg7[%c1_30, %c0_31, %c0_32] : memref<2x32x64xf32, #tpu.memory_space<vmem>>, vector<1x32x64xf32>
    %48 = vector.shape_cast %47 : vector<1x32x64xf32> to vector<32x64xf32>
    %49 = vector.shape_cast %46 : vector<32x64xf32> to vector<1x32x64xf32>
    tpu.vector_store %arg7[%c1_30, %c0_31, %c0_32], %49 {strides = array<i32>} : memref<2x32x64xf32, #tpu.memory_space<vmem>>, vector<1x32x64xf32>,
    return
  }
  func.func @transform_0(%arg0: i32) -> (i32, i32, i32) {
    %c0_i32 = arith.constant 0 : i32
    %c0_i32_0 = arith.constant 0 : i32
    %c0_i32_1 = arith.constant 0 : i32
    return %arg0, %c0_i32, %c0_i32_0 : i32, i32, i32
  }
  func.func @transform_1(%arg0: i32) -> (i32, i32) {
    %c0_i32 = arith.constant 0 : i32
    %c0_i32_0 = arith.constant 0 : i32
    %c0_i32_1 = arith.constant 0 : i32
    return %c0_i32, %c0_i32_0 : i32, i32
  }
  func.func @transform_2(%arg0: i32) -> (i32, i32) {
    %c0_i32 = arith.constant 0 : i32
    %c0_i32_0 = arith.constant 0 : i32
    %c0_i32_1 = arith.constant 0 : i32
    return %c0_i32, %c0_i32_0 : i32, i32
  }
  func.func @transform_3(%arg0: i32) -> (i32, i32) {
    %c0_i32 = arith.constant 0 : i32
    %c0_i32_0 = arith.constant 0 : i32
    %c0_i32_1 = arith.constant 0 : i32
    return %c0_i32, %c0_i32_0 : i32, i32
  }
  func.func @transform_4(%arg0: i32) -> (i32, i32) {
    %c0_i32 = arith.constant 0 : i32
    %c0_i32_0 = arith.constant 0 : i32
    %c0_i32_1 = arith.constant 0 : i32
    return %c0_i32, %c0_i32_0 : i32, i32
  }
  func.func @transform_5(%arg0: i32) -> (i32, i32) {
    %c0_i32 = arith.constant 0 : i32
    %c0_i32_0 = arith.constant 0 : i32
    %c0_i32_1 = arith.constant 0 : i32
    return %c0_i32, %c0_i32_0 : i32, i32
  }
  func.func @transform_6(%arg0: i32) -> (i32, i32, i32) {
    %c0_i32 = arith.constant 0 : i32
    %c0_i32_0 = arith.constant 0 : i32
    %c0_i32_1 = arith.constant 0 : i32
    return %arg0, %c0_i32, %c0_i32_0 : i32, i32, i32
  }
}

</mosaic_0001>

<llo_original>
// kernel: tpu_custom_call.1
$region0: #{tpu_custom_call.1}
  #allocation0 [shape = 'u32[]', space=smem, size = 0x4, offset = 0x4, fixed_abs, tag = 'smem constant byte address 0x4 - core index']
  #allocation1 [shape = 'u32[144,128]{1,0:T(1,128)}', space=vmem, size = 0x12000, scoped, tag = 'internal scratch']
  %s0 = inlined_call_operand.vmem [shape: f32[2,32,64], index: 0, kind: input, shape index: {}]
  %s1 = inlined_call_operand.vmem [shape: f32[2,32], index: 1, kind: input, shape index: {}]
  %s2 = inlined_call_operand.vmem [shape: f32[2,1], index: 2, kind: input, shape index: {}]
  %s3 = inlined_call_operand.vmem [shape: f32[2,1], index: 3, kind: input, shape index: {}]
  %s4 = inlined_call_operand.vmem [shape: f32[32,2], index: 4, kind: input, shape index: {}]
  %s5 = inlined_call_operand.vmem [shape: f32[32,1], index: 5, kind: input, shape index: {}]
  %s6 = inlined_call_operand.hbm [shape: f32[2,32,64], index: 6, kind: output, shape index: {}]
  %s7 = sld [smem:[#allocation0]]
  $region34: #{tpu_custom_call.1} parent=0
    _
  %s9 = ssub.s32 1, %s7
  %s10 = scalar_select 0, %s9, %s7
  $region1: #{tpu_custom_call.1} parent=0
    #allocation2 [shape = 'u8[32768]{0}', space=vmem, size = 0x8000, scoped, tag = 'output window, operand 0, single buffered']
    #allocation3 [shape = 's32[1]{0}', space=sflag, size = 0x4, scoped, tag = 'scoped memory for tpu_custom_call.1']
    %11 = vsyncpa [#allocation3], 0
    // Predicated region
    $region2: #{tpu_custom_call.1} parent=1 // pred_check
      _
    $region3: #{tpu_custom_call.1} parent=1 // pred_check_branch
      %13 = sbr.rel (0) target = $region5
    $region4: #{tpu_custom_call.1} parent=1 // pred_region
      _
    $region5: #{tpu_custom_call.1} parent=1 // pred_fallthru
      _
    // Predicated region
    $region6: #{tpu_custom_call.1} parent=1 // pred_check
      _
    $region7: #{tpu_custom_call.1} parent=1 // pred_check_branch
      %15 = sbr.rel (0) target = $region9
    $region8: #{tpu_custom_call.1} parent=1 // pred_region
      _
    $region9: #{tpu_custom_call.1} parent=1 // pred_fallthru
      _
    // Predicated region
    $region10: #{tpu_custom_call.1} parent=1 // pred_check
      _
    $region11: #{tpu_custom_call.1} parent=1 // pred_check_branch
      %17 = sbr.rel (0) target = $region13
    $region12: #{tpu_custom_call.1} parent=1 // pred_region
      _
    $region13: #{tpu_custom_call.1} parent=1 // pred_fallthru
      _
    // Predicated region
    $region14: #{tpu_custom_call.1} parent=1 // pred_check
      _
    $region15: #{tpu_custom_call.1} parent=1 // pred_check_branch
      %19 = sbr.rel (0) target = $region17
    $region16: #{tpu_custom_call.1} parent=1 // pred_region
      _
    $region17: #{tpu_custom_call.1} parent=1 // pred_fallthru
      _
    // Predicated region
    $region18: #{tpu_custom_call.1} parent=1 // pred_check
      _
    $region19: #{tpu_custom_call.1} parent=1 // pred_check_branch
      %21 = sbr.rel (0) target = $region21
    $region20: #{tpu_custom_call.1} parent=1 // pred_region
      _
    $region21: #{tpu_custom_call.1} parent=1 // pred_fallthru
      _
    // Predicated region
    $region22: #{tpu_custom_call.1} parent=1 // pred_check
      _
    $region23: #{tpu_custom_call.1} parent=1 // pred_check_branch
      %23 = sbr.rel (0) target = $region25
    $region24: #{tpu_custom_call.1} parent=1 // pred_region
      _
    $region25: #{tpu_custom_call.1} parent=1 // pred_fallthru
      _
    %v24 = vld [vmem:[%s0] sm:$0xff]
    %v25 = vld [vmem:[%s0 + $0x8] sm:$0xff]
    %v26 = vld [vmem:[%s0 + $0x10] sm:$0xff]
    %v27 = vld [vmem:[%s0 + $0x18] sm:$0xff]
    %vm28 = vcmask 523264
    %v29 = vsel %vm28, %v24, 0.0
    %30 = vadd.xlane.f32.xlu0 %v29
    %v31 = vpop.xlane.xlu0 %30
    %v32 = vsel %vm28, %v25, 0.0
    %33 = vadd.xlane.f32.xlu0 %v32
    %v34 = vpop.xlane.xlu0 %33
    %v35 = vsel %vm28, %v26, 0.0
    %36 = vadd.xlane.f32.xlu0 %v35
    %v37 = vpop.xlane.xlu0 %36
    %v38 = vsel %vm28, %v27, 0.0
    %39 = vadd.xlane.f32.xlu0 %v38
    %v40 = vpop.xlane.xlu0 %39
    %v41 = vrcp.pop 64.0
    %v42 = vmul.f32 %v31, %v41
    %v43 = vmul.f32 %v34, %v41
    %v44 = vmul.f32 %v37, %v41
    %v45 = vmul.f32 %v40, %v41
    %s46 = scalar_lea.vmem %s0, 32
    %v47 = vld [vmem:[%s46] sm:$0xff]
    %v48 = vld [vmem:[%s46 + $0x8] sm:$0xff]
    %v49 = vld [vmem:[%s46 + $0x10] sm:$0xff]
    %v50 = vld [vmem:[%s46 + $0x18] sm:$0xff]
    %v51 = vsel %vm28, %v47, 0.0
    %52 = vadd.xlane.f32.xlu0 %v51
    %v53 = vpop.xlane.xlu0 %52
    %v54 = vsel %vm28, %v48, 0.0
    %55 = vadd.xlane.f32.xlu0 %v54
    %v56 = vpop.xlane.xlu0 %55
    %v57 = vsel %vm28, %v49, 0.0
    %58 = vadd.xlane.f32.xlu0 %v57
    %v59 = vpop.xlane.xlu0 %58
    %v60 = vsel %vm28, %v50, 0.0
    %61 = vadd.xlane.f32.xlu0 %v60
    %v62 = vpop.xlane.xlu0 %61
    %v63 = vmul.f32 %v53, %v41
    %v64 = vmul.f32 %v56, %v41
    %v65 = vmul.f32 %v59, %v41
    %v66 = vmul.f32 %v62, %v41
    %vm67 = vcmask 7168
    %v68 = vsel %vm67, %v42, %v63
    %v69 = vsel %vm67, %v43, %v64
    %v70 = vsel %vm67, %v44, %v65
    %v71 = vsel %vm67, %v45, %v66
    %v72 = vld [vmem:[%s1] sm:$0x3]
    %v73 = vld [vmem:[%s2] sm:$0x3]
    %75 = vset.pattern.permute.xlu0 0
    %76 = vperm.xlu0 %75, %v73
    %v77 = vpop.permute.xlu0 %76
    %vm79 = vcmask 261120
    %v81 = vsel %vm79, %v72, 0
    %83 = vmatprep.subr.mxu0 0.0
    %84 = vmatpush1.msra.mxu0 %v68
    %85 = vmatprep.subr.mxu0 0.0
    %86 = vmatpush1.msra.mxu0 %v69
    %87 = vmatprep.subr.mxu0 0.0
    %88 = vmatpush1.msra.mxu0 %v70
    %89 = vmatprep.subr.mxu0 0.0
    %90 = vmatpush1.msra.mxu0 %v71
    %91 = vmatprep.subr.mxu0 0.0
    %92 = vmatpush1.msra.mxu0 0.0
    %93 = vmatprep.subr.mxu0 0.0
    %94 = vmatpush1.msra.mxu0 0.0
    %95 = vmatprep.subr.mxu0 0.0
    %96 = vmatpush1.msra.mxu0 0.0
    %97 = vmatprep.subr.mxu0 0.0
    %98 = vmatpush1.msra.mxu0 0.0
    %99 = vmatprep.subr.mxu0 0.0
    %100 = vmatpush1.msra.mxu0 0.0
    %101 = vmatprep.subr.mxu0 0.0
    %102 = vmatpush1.msra.mxu0 0.0
    %103 = vmatprep.subr.mxu0 0.0
    %104 = vmatpush1.msra.mxu0 0.0
    %105 = vmatprep.subr.mxu0 0.0
    %106 = vmatpush1.msra.mxu0 0.0
    %107 = vmatprep.subr.mxu0 0.0
    %108 = vmatpush1.msra.mxu0 0.0
    %109 = vmatprep.subr.mxu0 0.0
    %110 = vmatpush1.msra.mxu0 0.0
    %111 = vmatprep.subr.mxu0 0.0
    %112 = vmatpush1.msra.mxu0 0.0
    %113 = vmatprep.subr.mxu0 0.0
    %114 = vmatpush1.msra.mxu0 0.0
    %115 = vmatprep.subr.mxu0 0.0
    %116 = vmatpush1.msra.mxu0 0.0
    %117 = vmatprep.subr.mxu0 0.0
    %118 = vmatpush1.msra.mxu0 0.0
    %119 = vmatprep.subr.mxu0 0.0
    %120 = vmatpush1.msra.mxu0 0.0
    %121 = vmatprep.subr.mxu0 0.0
    %122 = vmatpush1.msra.mxu0 0.0
    %123 = vmatprep.subr.mxu0 0.0
    %124 = vmatpush1.msra.mxu0 0.0
    %125 = vmatprep.subr.mxu0 0.0
    %126 = vmatpush1.msra.mxu0 0.0
    %127 = vmatprep.subr.mxu0 0.0
    %128 = vmatpush1.msra.mxu0 0.0
    %129 = vmatprep.subr.mxu0 0.0
    %130 = vmatpush1.msra.mxu0 0.0
    %131 = vmatprep.subr.mxu0 0.0
    %132 = vmatpush1.msra.mxu0 0.0
    %133 = vmatprep.subr.mxu0 0.0
    %134 = vmatpush1.msra.mxu0 0.0
    %135 = vmatprep.subr.mxu0 0.0
    %136 = vmatpush1.msra.mxu0 0.0
    %137 = vmatprep.subr.mxu0 0.0
    %138 = vmatpush1.msra.mxu0 0.0
    %139 = vmatprep.subr.mxu0 0.0
    %140 = vmatpush1.msra.mxu0 0.0
    %141 = vmatprep.subr.mxu0 0.0
    %142 = vmatpush1.msra.mxu0 0.0
    %143 = vmatprep.subr.mxu0 0.0
    %144 = vmatpush1.msra.mxu0 0.0
    %145 = vmatprep.subr.mxu0 0.0
    %146 = vmatpush1.msra.mxu0 0.0
    %147 = vmatprep.mubr.f32.mxu0 0.0
    %148 = vmatmul.mubr.f32.gmra.mrb[0].mxu0 %v81
    %v149 = vpop.f32.mrb[0].mxu0
    %v150 = vadd.f32 %v77, %v149
    %v151 = vpop.f32.mrb[0].mxu0
    %152 = vdwg.mxu0
    %vm153 = vcmp.ge.f32.partialorder %v150, 0.0
    %v154 = vld [vmem:[%s3] sm:$0x3]
    %156 = vset.pattern.permute.xlu0 0
    %157 = vperm.xlu0 %156, %v154
    %v158 = vpop.permute.xlu0 %157
    %v160 = vmul.f32 %v158, %v150
    %v161 = vsel %vm153, %v150, %v160
    %v162 = vld [vmem:[%s4] sm:$0xff]
    %v163 = vld [vmem:[%s4 + $0x8] sm:$0xff]
    %v164 = vld [vmem:[%s4 + $0x10] sm:$0xff]
    %v165 = vld [vmem:[%s4 + $0x18] sm:$0xff]
    %v166 = vld [vmem:[%s5] sm:$0xff]
    %v167 = vld [vmem:[%s5 + $0x8] sm:$0xff]
    %v168 = vld [vmem:[%s5 + $0x10] sm:$0xff]
    %v169 = vld [vmem:[%s5 + $0x18] sm:$0xff]
    %171 = vset.pattern.permute.xlu0 0
    %172 = vperm.xlu0 %171, %v166
    %v173 = vpop.permute.xlu0 %172
    %176 = vset.pattern.permute.xlu0 0
    %177 = vperm.xlu0 %176, %v167
    %v178 = vpop.permute.xlu0 %177
    %181 = vset.pattern.permute.xlu0 0
    %182 = vperm.xlu0 %181, %v168
    %v183 = vpop.permute.xlu0 %182
    %186 = vset.pattern.permute.xlu0 0
    %187 = vperm.xlu0 %186, %v169
    %v188 = vpop.permute.xlu0 %187
    %vm190 = vcmask 15360
    %v192 = vsel %vm190, %v162, 0
    %v195 = vsel %vm190, %v163, 0
    %v198 = vsel %vm190, %v164, 0
    %v201 = vsel %vm190, %v165, 0
    %vm203 = vcmask 1041408
    %v205 = vsel %vm203, %v161, 0
    %207 = vmatprep.subr.mxu0 0.0
    %208 = vmatpush1.msra.mxu0 %v205
    %209 = vmatprep.subr.mxu0 0.0
    %210 = vmatpush1.msra.mxu0 0.0
    %211 = vmatprep.subr.mxu0 0.0
    %212 = vmatpush1.msra.mxu0 0.0
    %213 = vmatprep.subr.mxu0 0.0
    %214 = vmatpush1.msra.mxu0 0.0
    %215 = vmatprep.subr.mxu0 0.0
    %216 = vmatpush1.msra.mxu0 0.0
    %217 = vmatprep.subr.mxu0 0.0
    %218 = vmatpush1.msra.mxu0 0.0
    %219 = vmatprep.subr.mxu0 0.0
    %220 = vmatpush1.msra.mxu0 0.0
    %221 = vmatprep.subr.mxu0 0.0
    %222 = vmatpush1.msra.mxu0 0.0
    %223 = vmatprep.subr.mxu0 0.0
    %224 = vmatpush1.msra.mxu0 0.0
    %225 = vmatprep.subr.mxu0 0.0
    %226 = vmatpush1.msra.mxu0 0.0
    %227 = vmatprep.subr.mxu0 0.0
    %228 = vmatpush1.msra.mxu0 0.0
    %229 = vmatprep.subr.mxu0 0.0
    %230 = vmatpush1.msra.mxu0 0.0
    %231 = vmatprep.subr.mxu0 0.0
    %232 = vmatpush1.msra.mxu0 0.0
    %233 = vmatprep.subr.mxu0 0.0
    %234 = vmatpush1.msra.mxu0 0.0
    %235 = vmatprep.subr.mxu0 0.0
    %236 = vmatpush1.msra.mxu0 0.0
    %237 = vmatprep.subr.mxu0 0.0
    %238 = vmatpush1.msra.mxu0 0.0
    %239 = vmatprep.subr.mxu0 0.0
    %240 = vmatpush1.msra.mxu0 0.0
    %241 = vmatprep.subr.mxu0 0.0
    %242 = vmatpush1.msra.mxu0 0.0
    %243 = vmatprep.subr.mxu0 0.0
    %244 = vmatpush1.msra.mxu0 0.0
    %245 = vmatprep.subr.mxu0 0.0
    %246 = vmatpush1.msra.mxu0 0.0
    %247 = vmatprep.subr.mxu0 0.0
    %248 = vmatpush1.msra.mxu0 0.0
    %249 = vmatprep.subr.mxu0 0.0
    %250 = vmatpush1.msra.mxu0 0.0
    %251 = vmatprep.subr.mxu0 0.0
    %252 = vmatpush1.msra.mxu0 0.0
    %253 = vmatprep.subr.mxu0 0.0
    %254 = vmatpush1.msra.mxu0 0.0
    %255 = vmatprep.subr.mxu0 0.0
    %256 = vmatpush1.msra.mxu0 0.0
    %257 = vmatprep.subr.mxu0 0.0
    %258 = vmatpush1.msra.mxu0 0.0
    %259 = vmatprep.subr.mxu0 0.0
    %260 = vmatpush1.msra.mxu0 0.0
    %261 = vmatprep.subr.mxu0 0.0
    %262 = vmatpush1.msra.mxu0 0.0
    %263 = vmatprep.subr.mxu0 0.0
    %264 = vmatpush1.msra.mxu0 0.0
    %265 = vmatprep.subr.mxu0 0.0
    %266 = vmatpush1.msra.mxu0 0.0
    %267 = vmatprep.subr.mxu0 0.0
    %268 = vmatpush1.msra.mxu0 0.0
    %269 = vmatprep.subr.mxu0 0.0
    %270 = vmatpush1.msra.mxu0 0.0
    %271 = vmatprep.mubr.f32.mxu0 0.0
    %272 = vmatmul.mubr.f32.gmra.mrb[0].mxu0 %v192
    %v273 = vpop.f32.mrb[0].mxu0
    %v274 = vadd.f32 %v173, %v273
    %v275 = vpop.f32.mrb[0].mxu0
    %276 = vmatprep.mubr.f32.mxu0 0.0
    %277 = vmatmul.mubr.f32.gmra.mrb[0].mxu0 %v195
    %v278 = vpop.f32.mrb[0].mxu0
    %v279 = vadd.f32 %v178, %v278
    %v280 = vpop.f32.mrb[0].mxu0
    %281 = vmatprep.mubr.f32.mxu0 0.0
    %282 = vmatmul.mubr.f32.gmra.mrb[0].mxu0 %v198
    %v283 = vpop.f32.mrb[0].mxu0
    %v284 = vadd.f32 %v183, %v283
    %v285 = vpop.f32.mrb[0].mxu0
    %286 = vmatprep.mubr.f32.mxu0 0.0
    %287 = vmatmul.mubr.f32.gmra.mrb[0].mxu0 %v201
    %v288 = vpop.f32.mrb[0].mxu0
    %v289 = vadd.f32 %v188, %v288
    %v290 = vpop.f32.mrb[0].mxu0
    %291 = vdwg.mxu0
    %v292 = vxor.u32 %v274, 2147483648
    %v293 = vxor.u32 %v279, 2147483648
    %v294 = vxor.u32 %v284, 2147483648
    %v295 = vxor.u32 %v289, 2147483648
    %v296 = vmul.f32 %v292, 1.442695
    %v297 = vpow.pop %v296
    %v298 = vmul.f32 %v293, 1.442695
    %v299 = vpow.pop %v298
    %v300 = vmul.f32 %v294, 1.442695
    %v301 = vpow.pop %v300
    %v302 = vmul.f32 %v295, 1.442695
    %v303 = vpow.pop %v302
    %v304 = vadd.f32 %v297, 1.0
    %v305 = vadd.f32 %v299, 1.0
    %v306 = vadd.f32 %v301, 1.0
    %v307 = vadd.f32 %v303, 1.0
    %v308 = vrcp.pop %v304
    %v309 = vmul.f32 1.0, %v308
    %v310 = vrcp.pop %v305
    %v311 = vmul.f32 1.0, %v310
    %v312 = vrcp.pop %v306
    %v313 = vmul.f32 1.0, %v312
    %v314 = vrcp.pop %v307
    %v315 = vmul.f32 1.0, %v314
    %317 = vset.pattern.permute.xlu0 0
    %318 = vperm.xlu0 %317, %v309
    %v319 = vpop.permute.xlu0 %318
    %322 = vset.pattern.permute.xlu0 0
    %323 = vperm.xlu0 %322, %v311
    %v324 = vpop.permute.xlu0 %323
    %327 = vset.pattern.permute.xlu0 0
    %328 = vperm.xlu0 %327, %v313
    %v329 = vpop.permute.xlu0 %328
    %332 = vset.pattern.permute.xlu0 0
    %333 = vperm.xlu0 %332, %v315
    %v334 = vpop.permute.xlu0 %333
    %v336 = vmul.f32 %v24, %v319
    %v337 = vmul.f32 %v25, %v324
    %v338 = vmul.f32 %v26, %v329
    %v339 = vmul.f32 %v27, %v334
    %340 = vst.msk [vmem:[#allocation2] sm:$0xff] %vm28, %v336
    %341 = vst.msk [vmem:[#allocation2 + $0x8] sm:$0xff] %vm28, %v337
    %342 = vst.msk [vmem:[#allocation2 + $0x10] sm:$0xff] %vm28, %v338
    %343 = vst.msk [vmem:[#allocation2 + $0x18] sm:$0xff] %vm28, %v339
    %v344 = vld [vmem:[%s46] sm:$0xff]
    %v345 = vld [vmem:[%s46 + $0x8] sm:$0xff]
    %v346 = vld [vmem:[%s46 + $0x10] sm:$0xff]
    %v347 = vld [vmem:[%s46 + $0x18] sm:$0xff]
    %348 = vset.pattern.permute.xlu0 1
    %349 = vperm.xlu0 %348, %v309
    %v350 = vpop.permute.xlu0 %349
    %352 = vset.pattern.permute.xlu0 1
    %353 = vperm.xlu0 %352, %v311
    %v354 = vpop.permute.xlu0 %353
    %356 = vset.pattern.permute.xlu0 1
    %357 = vperm.xlu0 %356, %v313
    %v358 = vpop.permute.xlu0 %357
    %360 = vset.pattern.permute.xlu0 1
    %361 = vperm.xlu0 %360, %v315
    %v362 = vpop.permute.xlu0 %361
    %v364 = vmul.f32 %v344, %v350
    %v365 = vmul.f32 %v345, %v354
    %v366 = vmul.f32 %v346, %v358
    %v367 = vmul.f32 %v347, %v362
    %s368 = scalar_lea.vmem [#allocation2], 32
    %369 = vst.msk [vmem:[%s368] sm:$0xff] %vm28, %v364
    %370 = vst.msk [vmem:[%s368 + $0x8] sm:$0xff] %vm28, %v365
    %371 = vst.msk [vmem:[%s368 + $0x10] sm:$0xff] %vm28, %v366
    %372 = vst.msk [vmem:[%s368 + $0x18] sm:$0xff] %vm28, %v367
    // Predicated region
    $region26: #{tpu_custom_call.1} parent=1 // pred_check
      _
    $region27: #{tpu_custom_call.1} parent=1 // pred_check_branch
      %374 = sbr.rel (0) target = $region29
    $region28: #{tpu_custom_call.1} parent=1 // pred_region
      %s376 = ssub.s32 1024, 1024
      %377 = vsyncadd [#allocation3], %s376
      %s378 = sshll.u32 [#allocation2], 4
      %s379 = int_to_ptr.vmem [resolvable:$true] %s378
      %384 = dma.vmem_to_hbm [thread:$0]  %s379, 1024, %s6, [#allocation3], 128, 128, 8
    $region29: #{tpu_custom_call.1} parent=1 // pred_fallthru
      _
    // Predicated region
    $region30: #{tpu_custom_call.1} parent=1 // pred_check
      _
    $region31: #{tpu_custom_call.1} parent=1 // pred_check_branch
      %386 = sbr.rel (0) target = $region33
    $region32: #{tpu_custom_call.1} parent=1 // pred_region
      %387 = dma.done [#allocation3], 1024
    $region33: #{tpu_custom_call.1} parent=1 // pred_fallthru
      _
    %388 = vsyncpa [#allocation3], 1

</llo_original>
